<compile_context>
chip_gen: v7x
topology: tpu7x:2x2x1
jax: 0.10.0
libtpu: 0.0.40
codegen_flags: <defaults>
</compile_context>

<pallas_src>
import functools

import jax
import jax.numpy as jnp
import numpy as np
from jax.experimental import pallas as pl
from jax.experimental.pallas import tpu as pltpu


def _round_up(n, m):
    return (n + m - 1) // m * m


# ----------------------------------------------------------------------------
# Parameter construction (mirror of to_oh_zero_base / __init__)
# ----------------------------------------------------------------------------
def to_oh_zero_base(y, class_num):
    """y: int array of labels; returns (len(y), class_num - 1) one-hot (zero-based)."""
    y = jnp.asarray(y, jnp.int32)
    n = y.shape[0]
    oh = jnp.zeros((n, class_num - 1), jnp.float32)
    rows = jnp.arange(n)
    vals = jnp.where(y > 0, 1.0, 0.0).astype(jnp.float32)
    # y - 1 may be -1 for y == 0, but then we write 0.0 so the row stays zero.
    oh = oh.at[rows, y - 1].set(vals)
    return oh


# ----------------------------------------------------------------------------
# Pallas kernel
# ----------------------------------------------------------------------------
def _classifier_kernel(thr_ref, x_ref, clsT_ref, out_ref, *, num_classes, num_cols):
    x = x_ref[...]                       # (TB, Cp) f32, zero-padded columns
    cls_t = clsT_ref[...]                # (Cp, Mp) f32, {0,1} codebook (transposed)

    abs_x = jnp.abs(x)
    a = jnp.abs(x - 1.0) - abs_x                       # per-column delta if class bit set
    s = jnp.sum(abs_x, axis=1, keepdims=True)          # (TB, 1)

    # L1 distance to every class row via the MXU (exact: codebook is {0,1};
    # zero-padded columns of x / classes contribute nothing).
    d = s + jnp.dot(a, cls_t, preferred_element_type=jnp.float32)   # (TB, Mp)

    m_idx = jax.lax.broadcasted_iota(jnp.int32, d.shape, 1)         # (TB, Mp)
    if num_classes < d.shape[1]:
        # padded (all-zero) class rows must never win the argmin
        d = jnp.where(m_idx < num_classes, d, jnp.float32(3.4e38))

    # argmin over classes with first-index tie-break (== torch.min); M on lanes,
    # so both reductions are cheap lane/XLU reductions.
    min_d = jnp.min(d, axis=1, keepdims=True)                       # (TB, 1)
    cand = jnp.where(d <= min_d, m_idx, jnp.int32(2 ** 30))
    pred = jnp.min(cand, axis=1, keepdims=True) + 1                 # (TB, 1)

    # "all scores strictly below threshold -> predict 0"
    thr = thr_ref[0]
    if num_cols < x.shape[1]:
        c_idx = jax.lax.broadcasted_iota(jnp.int32, x.shape, 1)
        x_for_max = jnp.where(c_idx < num_cols, x, jnp.float32(-3.4e38))
    else:
        x_for_max = x
    any_ge = jnp.max(x_for_max, axis=1, keepdims=True) >= thr       # (TB, 1) bool
    out_ref[...] = jnp.where(any_ge, pred, jnp.int32(0)).astype(jnp.int32)


def oh_zero_based_classify(x, classes, threshold, *, block_b=512):
    """x: (B, C) f32 scores, classes: (M, C) {0,1} codebook -> (B,) int32 labels."""
    x = jnp.asarray(x, jnp.float32)
    classes = jnp.asarray(classes, jnp.float32)
    B, C = x.shape
    M = classes.shape[0]

    # Pad lanes / MXU-N dim to 128, batch to the tile size.
    c_pad = _round_up(C, 128)
    m_pad = _round_up(M, 128)
    tb = block_b if B >= block_b else _round_up(max(B, 8), 8)
    b_pad = _round_up(B, tb)

    x_p = jnp.zeros((b_pad, c_pad), jnp.float32).at[:B, :C].set(x)
    cls_t = jnp.zeros((c_pad, m_pad), jnp.float32).at[:C, :M].set(classes.T)
    thr = jnp.full((1,), threshold, jnp.float32)

    out = pl.pallas_call(
        functools.partial(_classifier_kernel, num_classes=M, num_cols=C),
        out_shape=jax.ShapeDtypeStruct((b_pad, 1), jnp.int32),
        grid=(b_pad // tb,),
        in_specs=[
            pl.BlockSpec(memory_space=pltpu.MemorySpace.SMEM),       # threshold scalar
            pl.BlockSpec((tb, c_pad), lambda i: (i, 0)),             # x tile (pipelined)
            pl.BlockSpec((c_pad, m_pad), lambda i: (0, 0)),          # codebook (resident)
        ],
        out_specs=pl.BlockSpec((tb, 1), lambda i: (i, 0)),
        compiler_params=pltpu.CompilerParams(
            dimension_semantics=("parallel",),   # shard batch tiles across TCs (v7x)
            vmem_limit_bytes=32 * 1024 * 1024),
    )(thr, x_p, cls_t)
    return out[:B, 0]


# ----------------------------------------------------------------------------
# Pure-numpy reference (exact transcription of the torch forward)
# ----------------------------------------------------------------------------
def _reference(x, classes, threshold):
    x = np.asarray(x)
    classes = np.asarray(classes)
    B = x.shape[0]
    preds = np.empty((B,), np.int32)
    for i in range(B):
        d = np.abs(x[i][None, :] - classes).sum(axis=1)   # (M,)
        preds[i] = int(np.argmin(d)) + 1
        if np.all(x[i] < threshold):
            preds[i] = 0
    return preds


if __name__ == "__main__":
    # label_map with 9 entries -> class_num = 9, C = M = 8 one-hot classes
    label_map = {"none": 0, "c1": 1, "c2": 2, "c3": 3,
                 "c4": 4, "c5": 5, "c6": 6, "c7": 7, "c8": 8}
    class_num = len(label_map)
    threshold = 0.4

    nonzero_labels = jnp.asarray(
        [idx for _, idx in label_map.items() if idx], jnp.int32)
    classes = to_oh_zero_base(nonzero_labels, class_num)   # (8, 8) identity here

    ok = True

    # Case 1: small batch, single tile (B=8, C=8 padded to 128).
    x1 = jax.random.uniform(jax.random.PRNGKey(0), (8, class_num - 1),
                            dtype=jnp.float32)
    p1 = jax.block_until_ready(oh_zero_based_classify(x1, classes, threshold))
    ok &= np.array_equal(np.asarray(p1), _reference(x1, classes, threshold))

    # Case 2: multi-tile grid with batch padding (B=150, block_b=64 -> 3 tiles).
    x2 = jax.random.uniform(jax.random.PRNGKey(1), (150, class_num - 1),
                            dtype=jnp.float32)
    p2 = jax.block_until_ready(
        oh_zero_based_classify(x2, classes, threshold, block_b=64))
    ok &= np.array_equal(np.asarray(p2), _reference(x2, classes, threshold))

    assert ok, (np.asarray(p1), _reference(x1, classes, threshold))
    print("KERNEL_OK")
</pallas_src>

<mosaic_0001>
module attributes {stable_mosaic.version = 11 : i64} {
  func.func @_classifier_kernel(%arg0: i32, %arg1: memref<1xf32, #tpu.memory_space<smem>>, %arg2: memref<8x128xf32, #tpu.memory_space<vmem>>, %arg3: memref<128x128xf32, #tpu.memory_space<vmem>>, %arg4: memref<8x1xi32, #tpu.memory_space<vmem>>) attributes {dimension_semantics = [#tpu.dimension_semantics<parallel>], iteration_bounds = array<i64: 1>, scalar_prefetch = 0 : i64, scratch_operands = 0 : i64, tpu.core_type = #tpu.core_type<tc>, window_params = [{transform_indices = @transform_0, window_bounds = array<i64: 1>}, {transform_indices = @transform_1, window_bounds = array<i64: 8, 128>}, {pipeline_mode = #tpu.pipeline_mode<synchronous>, transform_indices = @transform_2, window_bounds = array<i64: 128, 128>}, {transform_indices = @transform_3, window_bounds = array<i64: 8, 1>}]} {
    %c0 = arith.constant 0 : index
    %c0_0 = arith.constant 0 : index
    %0 = vector.load %arg2[%c0, %c0_0] : memref<8x128xf32, #tpu.memory_space<vmem>>, vector<8x128xf32>
    %c0_1 = arith.constant 0 : index
    %c0_2 = arith.constant 0 : index
    %1 = vector.load %arg3[%c0_1, %c0_2] : memref<128x128xf32, #tpu.memory_space<vmem>>, vector<128x128xf32>
    %2 = math.absf %0 : vector<8x128xf32>
    %cst = arith.constant 1.000000e+00 : f32
    %3 = vector.broadcast %cst : f32 to vector<8x128xf32>
    %4 = arith.subf %0, %3 : vector<8x128xf32>
    %5 = math.absf %4 : vector<8x128xf32>
    %6 = arith.subf %5, %2 : vector<8x128xf32>
    %cst_3 = arith.constant dense<0.000000e+00> : vector<8xf32>
    %7 = vector.multi_reduction <add>, %2, %cst_3 [1] : vector<8x128xf32> to vector<8xf32>
    %8 = vector.shape_cast %7 : vector<8xf32> to vector<8x1xf32>
    %cst_4 = arith.constant dense<0.000000e+00> : vector<8x128xf32>
    %9 = tpu.matmul %6, %1, %cst_4 {dimension_numbers = #tpu.dot_dimension_numbers<[1], [0], [0], [1], [0, 0, 1, 1], [], []>} : vector<8x128xf32>, vector<128x128xf32>, vector<8x128xf32> -> vector<8x128xf32>
    %10 = vector.broadcast %8 : vector<8x1xf32> to vector<8x128xf32>
    %11 = arith.addf %10, %9 : vector<8x128xf32>
    %12 = tpu.iota {dimensions = array<i32: 1>} : vector<8x128xi32>
    %c8_i32 = arith.constant 8 : i32
    %13 = vector.broadcast %c8_i32 : i32 to vector<8x128xi32>
    %14 = arith.cmpi slt, %12, %13 : vector<8x128xi32>
    %cst_5 = arith.constant 3.400000e+38 : f32
    %15 = vector.broadcast %cst_5 : f32 to vector<8x128xf32>
    %16 = arith.select %14, %11, %15 : vector<8x128xi1>, vector<8x128xf32>
    %cst_6 = arith.constant dense<0x7F800000> : vector<8xf32>
    %17 = vector.multi_reduction <minimumf>, %16, %cst_6 [1] : vector<8x128xf32> to vector<8xf32>
    %18 = vector.shape_cast %17 : vector<8xf32> to vector<8x1xf32>
    %19 = vector.broadcast %18 : vector<8x1xf32> to vector<8x128xf32>
    %20 = arith.cmpf ole, %16, %19 : vector<8x128xf32>
    %c1073741824_i32 = arith.constant 1073741824 : i32
    %21 = vector.broadcast %c1073741824_i32 : i32 to vector<8x128xi32>
    %22 = arith.select %20, %12, %21 : vector<8x128xi1>, vector<8x128xi32>
    %cst_7 = arith.constant dense<2147483647> : vector<8xi32>
    %23 = vector.multi_reduction <minsi>, %22, %cst_7 [1] : vector<8x128xi32> to vector<8xi32>
    %24 = vector.shape_cast %23 : vector<8xi32> to vector<8x1xi32>
    %c1_i32 = arith.constant 1 : i32
    %25 = vector.broadcast %c1_i32 : i32 to vector<8x1xi32>
    %26 = arith.addi %24, %25 : vector<8x1xi32>
    %c0_8 = arith.constant 0 : index
    %27 = memref.load %arg1[%c0_8] : memref<1xf32, #tpu.memory_space<smem>>
    %28 = tpu.iota {dimensions = array<i32: 1>} : vector<8x128xi32>
    %c8_i32_9 = arith.constant 8 : i32
    %29 = vector.broadcast %c8_i32_9 : i32 to vector<8x128xi32>
    %30 = arith.cmpi slt, %28, %29 : vector<8x128xi32>
    %cst_10 = arith.constant -3.400000e+38 : f32
    %31 = vector.broadcast %cst_10 : f32 to vector<8x128xf32>
    %32 = arith.select %30, %0, %31 : vector<8x128xi1>, vector<8x128xf32>
    %cst_11 = arith.constant dense<0xFF800000> : vector<8xf32>
    %33 = vector.multi_reduction <maximumf>, %32, %cst_11 [1] : vector<8x128xf32> to vector<8xf32>
    %34 = vector.shape_cast %33 : vector<8xf32> to vector<8x1xf32>
    %35 = vector.broadcast %27 : f32 to vector<8x1xf32>
    %36 = arith.cmpf oge, %34, %35 : vector<8x1xf32>
    %c0_i32 = arith.constant 0 : i32
    %37 = vector.broadcast %c0_i32 : i32 to vector<8x1xi32>
    %38 = arith.select %36, %26, %37 : vector<8x1xi1>, vector<8x1xi32>
    %c0_12 = arith.constant 0 : index
    %c0_13 = arith.constant 0 : index
    %39 = vector.load %arg4[%c0_12, %c0_13] : memref<8x1xi32, #tpu.memory_space<vmem>>, vector<8x1xi32>
    tpu.vector_store %arg4[%c0_12, %c0_13], %38 {strides = array<i32>} : memref<8x1xi32, #tpu.memory_space<vmem>>, vector<8x1xi32>,
    return
  }
  func.func @transform_0(%arg0: i32) -> i32 {
    %c0_i32 = arith.constant 0 : i32
    %c0_i32_0 = arith.constant 0 : i32
    return %c0_i32 : i32
  }
  func.func @transform_1(%arg0: i32) -> (i32, i32) {
    %c0_i32 = arith.constant 0 : i32
    %c0_i32_0 = arith.constant 0 : i32
    return %arg0, %c0_i32 : i32, i32
  }
  func.func @transform_2(%arg0: i32) -> (i32, i32) {
    %c0_i32 = arith.constant 0 : i32
    %c0_i32_0 = arith.constant 0 : i32
    %c0_i32_1 = arith.constant 0 : i32
    return %c0_i32, %c0_i32_0 : i32, i32
  }
  func.func @transform_3(%arg0: i32) -> (i32, i32) {
    %c0_i32 = arith.constant 0 : i32
    %c0_i32_0 = arith.constant 0 : i32
    return %arg0, %c0_i32 : i32, i32
  }
}

</mosaic_0001>

<llo_original>
// kernel: tpu_custom_call.1
$region0: #{tpu_custom_call.1}
  #allocation0 [shape = 'u32[]', space=smem, size = 0x4, offset = 0x4, fixed_abs, tag = 'smem constant byte address 0x4 - core index']
  #allocation1 [shape = 'u32[144,128]{1,0:T(1,128)}', space=vmem, size = 0x12000, scoped, tag = 'internal scratch']
  #allocation2 [shape = 'f32[1]{0:T(128)S(6)}', space=smem, size = 0x200, scoped, tag = 'scoped memory for tpu_custom_call.1']
  %s0 = inlined_call_operand.<no memory space> [shape: f32[1], index: 0, kind: input, shape index: {}]
  %s1 = inlined_call_operand.hbm [shape: f32[8,128], index: 1, kind: input, shape index: {}]
  %s2 = inlined_call_operand.hbm [shape: f32[128,128], index: 2, kind: input, shape index: {}]
  %s3 = inlined_call_operand.vmem [shape: s32[8,1], index: 3, kind: output, shape index: {}]
  %s4 = sld [smem:[#allocation0]]
  $region30: #{tpu_custom_call.1} parent=0
    _
  %s6 = ssub.s32 1, %s4
  %s7 = scalar_select 0, %s6, %s4
  %8 = sst [smem:[#allocation2]] %s0
  $region1: #{tpu_custom_call.1} parent=0
    #allocation3 [shape = 'u8[4096]{0}', space=vmem, size = 0x1000, scoped, tag = 'input window, operand 1, single buffered']
    #allocation4 [shape = 's32[1]{0}', space=sflag, size = 0x4, scoped, tag = 'scoped memory for tpu_custom_call.1']
    #allocation5 [shape = 'u8[65536]{0}', space=vmem, size = 0x10000, scoped, tag = 'input window, operand 2, single buffered']
    #allocation6 [shape = 's32[1]{0}', space=sflag, size = 0x4, scoped, tag = 'scoped memory for tpu_custom_call.1']
    %9 = vsyncpa [#allocation4], 0
    %10 = vsyncpa [#allocation6], 0
    // Predicated region
    $region2: #{tpu_custom_call.1} parent=1 // pred_check
      _
    $region3: #{tpu_custom_call.1} parent=1 // pred_check_branch
      %12 = sbr.rel (0) target = $region5
    $region4: #{tpu_custom_call.1} parent=1 // pred_region
      _
    $region5: #{tpu_custom_call.1} parent=1 // pred_fallthru
      _
    // Predicated region
    $region6: #{tpu_custom_call.1} parent=1 // pred_check
      _
    $region7: #{tpu_custom_call.1} parent=1 // pred_check_branch
      %14 = sbr.rel (0) target = $region9
    $region8: #{tpu_custom_call.1} parent=1 // pred_region
      %s16 = ssub.s32 128, 128
      %17 = vsyncadd [#allocation4], %s16
      %s19 = sshll.u32 [#allocation3], 4
      %s20 = int_to_ptr.vmem [resolvable:$true] %s19
      %22 = dma.hbm_to_vmem [thread:$0]  %s1, 128, %s20, [#allocation4]
    $region9: #{tpu_custom_call.1} parent=1 // pred_fallthru
      _
    // Predicated region
    $region10: #{tpu_custom_call.1} parent=1 // pred_check
      _
    $region11: #{tpu_custom_call.1} parent=1 // pred_check_branch
      %24 = sbr.rel (0) target = $region13
    $region12: #{tpu_custom_call.1} parent=1 // pred_region
      %s26 = ssub.s32 2048, 2048
      %27 = vsyncadd [#allocation6], %s26
      %s28 = sshll.u32 [#allocation5], 4
      %s29 = int_to_ptr.vmem [resolvable:$true] %s28
      %34 = dma.hbm_to_vmem [thread:$0]  %s2, 2048, %s29, [#allocation6], 128, 128, 8
    $region13: #{tpu_custom_call.1} parent=1 // pred_fallthru
      _
    // Predicated region
    $region14: #{tpu_custom_call.1} parent=1 // pred_check
      _
    $region15: #{tpu_custom_call.1} parent=1 // pred_check_branch
      %36 = sbr.rel (0) target = $region17
    $region16: #{tpu_custom_call.1} parent=1 // pred_region
      %37 = dma.done [#allocation4], 128
    $region17: #{tpu_custom_call.1} parent=1 // pred_fallthru
      _
    // Predicated region
    $region18: #{tpu_custom_call.1} parent=1 // pred_check
      _
    $region19: #{tpu_custom_call.1} parent=1 // pred_check_branch
      %39 = sbr.rel (0) target = $region21
    $region20: #{tpu_custom_call.1} parent=1 // pred_region
      %40 = dma.done [#allocation6], 2048
    $region21: #{tpu_custom_call.1} parent=1 // pred_fallthru
      _
    %v41 = vld [vmem:[#allocation3] sm:$0xff]
    %v42 = vld [vmem:[#allocation5] sm:$0xff]
    %v43 = vld [vmem:[#allocation5 + $0x8] sm:$0xff]
    %v44 = vld [vmem:[#allocation5 + $0x10] sm:$0xff]
    %v45 = vld [vmem:[#allocation5 + $0x18] sm:$0xff]
    %v46 = vld [vmem:[#allocation5 + $0x20] sm:$0xff]
    %v47 = vld [vmem:[#allocation5 + $0x28] sm:$0xff]
    %v48 = vld [vmem:[#allocation5 + $0x30] sm:$0xff]
    %v49 = vld [vmem:[#allocation5 + $0x38] sm:$0xff]
    %v50 = vld [vmem:[#allocation5 + $0x40] sm:$0xff]
    %v51 = vld [vmem:[#allocation5 + $0x48] sm:$0xff]
    %v52 = vld [vmem:[#allocation5 + $0x50] sm:$0xff]
    %v53 = vld [vmem:[#allocation5 + $0x58] sm:$0xff]
    %v54 = vld [vmem:[#allocation5 + $0x60] sm:$0xff]
    %v55 = vld [vmem:[#allocation5 + $0x68] sm:$0xff]
    %v56 = vld [vmem:[#allocation5 + $0x70] sm:$0xff]
    %v57 = vld [vmem:[#allocation5 + $0x78] sm:$0xff]
    %v58 = vand.u32 2147483647, %v41
    %v59 = vsub.f32 %v41, 1.0
    %v60 = vand.u32 2147483647, %v59
    %v61 = vsub.f32 %v60, %v58
    %62 = vadd.xlane.f32.xlu0 %v58
    %v63 = vpop.xlane.xlu0 %62
    %64 = vmatprep.subr.mxu0 0.0
    %65 = vmatpush1.msra.mxu0 %v42
    %66 = vmatprep.subr.mxu0 0.0
    %67 = vmatpush1.msra.mxu0 %v43
    %68 = vmatprep.subr.mxu0 0.0
    %69 = vmatpush1.msra.mxu0 %v44
    %70 = vmatprep.subr.mxu0 0.0
    %71 = vmatpush1.msra.mxu0 %v45
    %72 = vmatprep.subr.mxu0 0.0
    %73 = vmatpush1.msra.mxu0 %v46
    %74 = vmatprep.subr.mxu0 0.0
    %75 = vmatpush1.msra.mxu0 %v47
    %76 = vmatprep.subr.mxu0 0.0
    %77 = vmatpush1.msra.mxu0 %v48
    %78 = vmatprep.subr.mxu0 0.0
    %79 = vmatpush1.msra.mxu0 %v49
    %80 = vmatprep.subr.mxu0 0.0
    %81 = vmatpush1.msra.mxu0 %v50
    %82 = vmatprep.subr.mxu0 0.0
    %83 = vmatpush1.msra.mxu0 %v51
    %84 = vmatprep.subr.mxu0 0.0
    %85 = vmatpush1.msra.mxu0 %v52
    %86 = vmatprep.subr.mxu0 0.0
    %87 = vmatpush1.msra.mxu0 %v53
    %88 = vmatprep.subr.mxu0 0.0
    %89 = vmatpush1.msra.mxu0 %v54
    %90 = vmatprep.subr.mxu0 0.0
    %91 = vmatpush1.msra.mxu0 %v55
    %92 = vmatprep.subr.mxu0 0.0
    %93 = vmatpush1.msra.mxu0 %v56
    %94 = vmatprep.subr.mxu0 0.0
    %95 = vmatpush1.msra.mxu0 %v57
    %96 = vmatprep.subr.mxu0 0.0
    %97 = vmatpush1.msra.mxu0 0.0
    %98 = vmatprep.subr.mxu0 0.0
    %99 = vmatpush1.msra.mxu0 0.0
    %100 = vmatprep.subr.mxu0 0.0
    %101 = vmatpush1.msra.mxu0 0.0
    %102 = vmatprep.subr.mxu0 0.0
    %103 = vmatpush1.msra.mxu0 0.0
    %104 = vmatprep.subr.mxu0 0.0
    %105 = vmatpush1.msra.mxu0 0.0
    %106 = vmatprep.subr.mxu0 0.0
    %107 = vmatpush1.msra.mxu0 0.0
    %108 = vmatprep.subr.mxu0 0.0
    %109 = vmatpush1.msra.mxu0 0.0
    %110 = vmatprep.subr.mxu0 0.0
    %111 = vmatpush1.msra.mxu0 0.0
    %112 = vmatprep.subr.mxu0 0.0
    %113 = vmatpush1.msra.mxu0 0.0
    %114 = vmatprep.subr.mxu0 0.0
    %115 = vmatpush1.msra.mxu0 0.0
    %116 = vmatprep.subr.mxu0 0.0
    %117 = vmatpush1.msra.mxu0 0.0
    %118 = vmatprep.subr.mxu0 0.0
    %119 = vmatpush1.msra.mxu0 0.0
    %120 = vmatprep.subr.mxu0 0.0
    %121 = vmatpush1.msra.mxu0 0.0
    %122 = vmatprep.subr.mxu0 0.0
    %123 = vmatpush1.msra.mxu0 0.0
    %124 = vmatprep.subr.mxu0 0.0
    %125 = vmatpush1.msra.mxu0 0.0
    %126 = vmatprep.subr.mxu0 0.0
    %127 = vmatpush1.msra.mxu0 0.0
    %128 = vmatprep.mubr.f32.mxu0 0.0
    %129 = vmatmul.mubr.f32.gmra.mrb[0].mxu0 %v61
    %v130 = vpop.f32.mrb[0].mxu0
    %v131 = vadd.f32 0.0, %v130
    %v132 = vpop.f32.mrb[0].mxu0
    %133 = vdwg.mxu0
    %v134 = vadd.f32 %v63, %v131
    %v135 = vlaneseq
    %v136 = vand.u32 %v135, 127
    %vm137 = vcmp.lt.s32.totalorder %v136, 8
    %v138 = vsel %vm137, %v134, 3.4e+38
    %139 = vmin.xlane.f32.xlu0 %v138
    %v140 = vpop.xlane.xlu0 %139
    %vm141 = vcmp.le.f32.partialorder %v138, %v140
    %v142 = vsel %vm141, %v136, 1073741824
    %v143 = vand.u32 %v142, 65535
    %v144 = vshra.s32 %v142, 16
    %v145 = vcvt.s32.f32 %v143
    %v146 = vcvt.s32.f32 %v144
    %147 = vmin.xlane.f32.xlu0 %v146
    %v148 = vpop.xlane.xlu0 %147
    %vm149 = vcmp.eq.f32.partialorder %v146, %v148
    %v150 = vsel %vm149, %v145, inf
    %151 = vmin.xlane.f32.xlu0 %v150
    %v152 = vpop.xlane.xlu0 %151
    %v153 = vcvt.f32.s32 %v152
    %v154 = vcvt.f32.s32 %v148
    %v155 = vshll.u32 %v154, 16
    %v156 = vadd.s32 %v155, %v153
    %v157 = vadd.s32 %v156, 1
    %s158 = sld [smem:[#allocation2]]
    %v159 = vsel %vm137, %v41, -3.4e+38
    %160 = vmax.xlane.f32.xlu0 %v159
    %v161 = vpop.xlane.xlu0 %160
    %v162 = vstv %s158
    %vm163 = vcmp.ge.f32.partialorder %v161, %v162
    %v164 = vsel %vm163, %v157, 0
    %vm165 = vcmask 7168
    %166 = vst.msk [vmem:[%s3] sm:$0xff] %vm165, %v164
    // Predicated region
    $region22: #{tpu_custom_call.1} parent=1 // pred_check
      _
    $region23: #{tpu_custom_call.1} parent=1 // pred_check_branch
      %168 = sbr.rel (0) target = $region25
    $region24: #{tpu_custom_call.1} parent=1 // pred_region
      _
    $region25: #{tpu_custom_call.1} parent=1 // pred_fallthru
      _
    // Predicated region
    $region26: #{tpu_custom_call.1} parent=1 // pred_check
      _
    $region27: #{tpu_custom_call.1} parent=1 // pred_check_branch
      %170 = sbr.rel (0) target = $region29
    $region28: #{tpu_custom_call.1} parent=1 // pred_region
      _
    $region29: #{tpu_custom_call.1} parent=1 // pred_fallthru
      _
    %171 = vsyncpa [#allocation4], 1
    %172 = vsyncpa [#allocation6], 1

</llo_original>
